<compile_context>
chip_gen: v5e
topology: v5e:2x2
jax: 0.10.0
libtpu: 0.0.40
codegen_flags: <defaults>
</compile_context>

<pallas_src>
import jax
import jax.numpy as jnp
import numpy as np
from jax.experimental import pallas as pl
from jax.experimental.pallas import tpu as pltpu


# ----------------------------- kernel ---------------------------------------

def make_stacked_rnn_kernel(num_layers, B, T, D, H):
    def kernel(*refs):
        idx = 0
        x_ref = refs[idx]; idx += 1            # (T*B, D), time-major
        wih0_ref = refs[idx]; idx += 1         # (D, H)
        whh0_ref = refs[idx]; idx += 1         # (H, H)
        b0_ref = refs[idx]; idx += 1           # (1, H) = bih0 + bhh0
        upper = []
        for _ in range(1, num_layers):
            upper.append((refs[idx], refs[idx + 1]))   # (2H, H), (1, H)
            idx += 2
        wfc_ref = refs[idx]                    # (H, O)
        bfc_ref = refs[idx + 1]                # (1, O)
        o_ref = refs[idx + 2]                  # (B, O)

        # Hoist weight loads out of the time loop (tiny; fits in vregs at H=32).
        whh0 = whh0_ref[...]
        w_up = [w[...] for (w, _) in upper]
        b_up = [b[...] for (_, b) in upper]

        # Batched layer-0 input->hidden projection for ALL time steps:
        # one (T*B, D) @ (D, H) MXU op; folded bias added once over the block.
        pre0 = jnp.dot(x_ref[...], wih0_ref[...],
                       preferred_element_type=jnp.float32)
        pre0 = (pre0 + b0_ref[...]).reshape(T, B, H)   # leading-dim indexable

        hs = [jnp.zeros((B, H), jnp.float32) for _ in range(num_layers)]
        for t in range(T):   # static unroll; recurrence is sequential by nature
            # Layer 0: biases already folded into pre0.
            z = pre0[t] + jnp.dot(hs[0], whh0,
                                  preferred_element_type=jnp.float32)
            hs[0] = jnp.tanh(z)
            # Upper layers: single fused (B, 2H) @ (2H, H) matmul each.
            for l in range(1, num_layers):
                cat = jnp.concatenate([hs[l - 1], hs[l]], axis=-1)
                z = (jnp.dot(cat, w_up[l - 1],
                             preferred_element_type=jnp.float32)
                     + b_up[l - 1])
                hs[l] = jnp.tanh(z)

        # fc on the last time step of the top layer.
        o_ref[...] = (jnp.dot(hs[-1], wfc_ref[...],
                              preferred_element_type=jnp.float32)
                      + bfc_ref[...])
    return kernel


# ----------------------------- wrapper ---------------------------------------

def stacked_rnn(x, params):
    """x: (B, T, D).
    params['layers'] = [(wih(in,H), whh(H,H), bih(1,H), bhh(1,H)), ...]
    (weights already transposed to (in, out) = PyTorch weight.T),
    params['wfc'] (H, O), params['bfc'] (1, O)."""
    B, T, D = x.shape
    layers = params["layers"]
    num_layers = len(layers)
    H = layers[0][1].shape[0]
    O = params["wfc"].shape[1]

    wih0, whh0, bih0, bhh0 = layers[0]

    # Wrapper-side layout plumbing: time-major, biases folded, upper-layer
    # weights fused into a single (2H, H) block per layer.
    x_tm = jnp.transpose(x, (1, 0, 2)).reshape(T * B, D)
    flat_inputs = [x_tm, wih0, whh0, bih0 + bhh0]
    for (wih, whh, bih, bhh) in layers[1:]:
        flat_inputs.append(jnp.concatenate([wih, whh], axis=0))   # (2H, H)
        flat_inputs.append(bih + bhh)                             # (1, H)
    flat_inputs += [params["wfc"], params["bfc"]]

    vmem = pl.BlockSpec(memory_space=pltpu.MemorySpace.VMEM)
    return pl.pallas_call(
        make_stacked_rnn_kernel(num_layers, B, T, D, H),
        out_shape=jax.ShapeDtypeStruct((B, O), jnp.float32),
        in_specs=[vmem] * len(flat_inputs),
        out_specs=vmem,
    )(*flat_inputs)


# ----------------------------- reference -------------------------------------

def reference(x, params):
    """Pure-JAX mirror of PyTorch: nn.RNN(batch_first=True, tanh), h0=0,
    fc(out[:, -1, :])."""
    B, T, _ = x.shape
    layers = params["layers"]
    hs = [jnp.zeros((B, whh.shape[0]), jnp.float32) for (_, whh, _, _) in layers]
    for t in range(T):
        inp = x[:, t, :]
        for l, (wih, whh, bih, bhh) in enumerate(layers):
            hs[l] = jnp.tanh(inp @ wih + bih[0] + hs[l] @ whh + bhh[0])
            inp = hs[l]
    return hs[-1] @ params["wfc"] + params["bfc"][0]


# ----------------------------- main -------------------------------------------

if __name__ == "__main__":
    # StackedRNN(input_size=16, hidden_size=32, num_layers=2, output_size=8)
    # applied to x of shape (batch=2, seq=8, input_size=16).
    B, T, D, H, L, O = 2, 8, 16, 32, 2, 8

    key = jax.random.PRNGKey(0)
    keys = jax.random.split(key, 4 * L + 3)

    def init(k, shape):
        return 0.1 * jax.random.normal(k, shape, jnp.float32)

    ki = 0
    layers = []
    for l in range(L):
        in_dim = D if l == 0 else H
        wih = init(keys[ki], (in_dim, H)); ki += 1   # = PyTorch weight_ih_l{l}.T
        whh = init(keys[ki], (H, H));     ki += 1    # = PyTorch weight_hh_l{l}.T
        bih = init(keys[ki], (1, H));     ki += 1
        bhh = init(keys[ki], (1, H));     ki += 1
        layers.append((wih, whh, bih, bhh))
    params = {
        "layers": layers,
        "wfc": init(keys[ki], (H, O)),               # = PyTorch fc.weight.T
        "bfc": init(keys[ki + 1], (1, O)),
    }
    x = jax.random.normal(keys[ki + 2], (B, T, D), jnp.float32)

    y = jax.block_until_ready(stacked_rnn(x, params))
    y_ref = jax.block_until_ready(reference(x, params))

    assert y.shape == (B, O)
    np.testing.assert_allclose(np.asarray(y), np.asarray(y_ref),
                               rtol=1e-4, atol=1e-4)
    print("KERNEL_OK")
</pallas_src>

<mosaic_0001>
module attributes {stable_mosaic.version = 11 : i64} {
  func.func @kernel(%arg0: memref<16x16xf32, #tpu.memory_space<vmem>>, %arg1: memref<16x32xf32, #tpu.memory_space<vmem>>, %arg2: memref<32x32xf32, #tpu.memory_space<vmem>>, %arg3: memref<1x32xf32, #tpu.memory_space<vmem>>, %arg4: memref<64x32xf32, #tpu.memory_space<vmem>>, %arg5: memref<1x32xf32, #tpu.memory_space<vmem>>, %arg6: memref<32x8xf32, #tpu.memory_space<vmem>>, %arg7: memref<1x8xf32, #tpu.memory_space<vmem>>, %arg8: memref<2x8xf32, #tpu.memory_space<vmem>>) attributes {dimension_semantics = [], scalar_prefetch = 0 : i64, scratch_operands = 0 : i64, tpu.core_type = #tpu.core_type<tc>} {
    %c0 = arith.constant 0 : index
    %c0_0 = arith.constant 0 : index
    %0 = vector.load %arg2[%c0, %c0_0] : memref<32x32xf32, #tpu.memory_space<vmem>>, vector<32x32xf32>
    %c0_1 = arith.constant 0 : index
    %c0_2 = arith.constant 0 : index
    %1 = vector.load %arg4[%c0_1, %c0_2] : memref<64x32xf32, #tpu.memory_space<vmem>>, vector<64x32xf32>
    %c0_3 = arith.constant 0 : index
    %c0_4 = arith.constant 0 : index
    %2 = vector.load %arg5[%c0_3, %c0_4] : memref<1x32xf32, #tpu.memory_space<vmem>>, vector<1x32xf32>
    %c0_5 = arith.constant 0 : index
    %c0_6 = arith.constant 0 : index
    %3 = vector.load %arg0[%c0_5, %c0_6] : memref<16x16xf32, #tpu.memory_space<vmem>>, vector<16x16xf32>
    %c0_7 = arith.constant 0 : index
    %c0_8 = arith.constant 0 : index
    %4 = vector.load %arg1[%c0_7, %c0_8] : memref<16x32xf32, #tpu.memory_space<vmem>>, vector<16x32xf32>
    %cst = arith.constant dense<0.000000e+00> : vector<16x32xf32>
    %5 = tpu.matmul %3, %4, %cst {dimension_numbers = #tpu.dot_dimension_numbers<[1], [0], [0], [1], [0, 0, 1, 1], [], []>} : vector<16x16xf32>, vector<16x32xf32>, vector<16x32xf32> -> vector<16x32xf32>
    %c0_9 = arith.constant 0 : index
    %c0_10 = arith.constant 0 : index
    %6 = vector.load %arg3[%c0_9, %c0_10] : memref<1x32xf32, #tpu.memory_space<vmem>>, vector<1x32xf32>
    %7 = vector.broadcast %6 : vector<1x32xf32> to vector<16x32xf32>
    %8 = arith.addf %5, %7 : vector<16x32xf32>
    %9 = vector.shape_cast %8 : vector<16x32xf32> to vector<8x2x32xf32>
    %cst_11 = arith.constant 0.000000e+00 : f32
    %10 = vector.broadcast %cst_11 : f32 to vector<2x32xf32>
    %cst_12 = arith.constant 0.000000e+00 : f32
    %11 = vector.broadcast %cst_12 : f32 to vector<2x32xf32>
    %12 = vector.extract_strided_slice %9 {offsets = [0, 0, 0], sizes = [1, 2, 32], strides = [1, 1, 1]} : vector<8x2x32xf32> to vector<1x2x32xf32>
    %13 = vector.shape_cast %12 : vector<1x2x32xf32> to vector<2x32xf32>
    %cst_13 = arith.constant dense<0.000000e+00> : vector<2x32xf32>
    %14 = tpu.matmul %10, %0, %cst_13 {dimension_numbers = #tpu.dot_dimension_numbers<[1], [0], [0], [1], [0, 0, 1, 1], [], []>} : vector<2x32xf32>, vector<32x32xf32>, vector<2x32xf32> -> vector<2x32xf32>
    %15 = arith.addf %13, %14 : vector<2x32xf32>
    %16 = math.tanh %15 : vector<2x32xf32>
    %17 = tpu.concatenate %16, %11 in 1 : vector<2x32xf32>, vector<2x32xf32> -> vector<2x64xf32>
    %cst_14 = arith.constant dense<0.000000e+00> : vector<2x32xf32>
    %18 = tpu.matmul %17, %1, %cst_14 {dimension_numbers = #tpu.dot_dimension_numbers<[1], [0], [0], [1], [0, 0, 1, 1], [], []>} : vector<2x64xf32>, vector<64x32xf32>, vector<2x32xf32> -> vector<2x32xf32>
    %19 = vector.broadcast %2 : vector<1x32xf32> to vector<2x32xf32>
    %20 = arith.addf %18, %19 : vector<2x32xf32>
    %21 = math.tanh %20 : vector<2x32xf32>
    %22 = vector.extract_strided_slice %9 {offsets = [1, 0, 0], sizes = [1, 2, 32], strides = [1, 1, 1]} : vector<8x2x32xf32> to vector<1x2x32xf32>
    %23 = vector.shape_cast %22 : vector<1x2x32xf32> to vector<2x32xf32>
    %cst_15 = arith.constant dense<0.000000e+00> : vector<2x32xf32>
    %24 = tpu.matmul %16, %0, %cst_15 {dimension_numbers = #tpu.dot_dimension_numbers<[1], [0], [0], [1], [0, 0, 1, 1], [], []>} : vector<2x32xf32>, vector<32x32xf32>, vector<2x32xf32> -> vector<2x32xf32>
    %25 = arith.addf %23, %24 : vector<2x32xf32>
    %26 = math.tanh %25 : vector<2x32xf32>
    %27 = tpu.concatenate %26, %21 in 1 : vector<2x32xf32>, vector<2x32xf32> -> vector<2x64xf32>
    %cst_16 = arith.constant dense<0.000000e+00> : vector<2x32xf32>
    %28 = tpu.matmul %27, %1, %cst_16 {dimension_numbers = #tpu.dot_dimension_numbers<[1], [0], [0], [1], [0, 0, 1, 1], [], []>} : vector<2x64xf32>, vector<64x32xf32>, vector<2x32xf32> -> vector<2x32xf32>
    %29 = vector.broadcast %2 : vector<1x32xf32> to vector<2x32xf32>
    %30 = arith.addf %28, %29 : vector<2x32xf32>
    %31 = math.tanh %30 : vector<2x32xf32>
    %32 = vector.extract_strided_slice %9 {offsets = [2, 0, 0], sizes = [1, 2, 32], strides = [1, 1, 1]} : vector<8x2x32xf32> to vector<1x2x32xf32>
    %33 = vector.shape_cast %32 : vector<1x2x32xf32> to vector<2x32xf32>
    %cst_17 = arith.constant dense<0.000000e+00> : vector<2x32xf32>
    %34 = tpu.matmul %26, %0, %cst_17 {dimension_numbers = #tpu.dot_dimension_numbers<[1], [0], [0], [1], [0, 0, 1, 1], [], []>} : vector<2x32xf32>, vector<32x32xf32>, vector<2x32xf32> -> vector<2x32xf32>
    %35 = arith.addf %33, %34 : vector<2x32xf32>
    %36 = math.tanh %35 : vector<2x32xf32>
    %37 = tpu.concatenate %36, %31 in 1 : vector<2x32xf32>, vector<2x32xf32> -> vector<2x64xf32>
    %cst_18 = arith.constant dense<0.000000e+00> : vector<2x32xf32>
    %38 = tpu.matmul %37, %1, %cst_18 {dimension_numbers = #tpu.dot_dimension_numbers<[1], [0], [0], [1], [0, 0, 1, 1], [], []>} : vector<2x64xf32>, vector<64x32xf32>, vector<2x32xf32> -> vector<2x32xf32>
    %39 = vector.broadcast %2 : vector<1x32xf32> to vector<2x32xf32>
    %40 = arith.addf %38, %39 : vector<2x32xf32>
    %41 = math.tanh %40 : vector<2x32xf32>
    %42 = vector.extract_strided_slice %9 {offsets = [3, 0, 0], sizes = [1, 2, 32], strides = [1, 1, 1]} : vector<8x2x32xf32> to vector<1x2x32xf32>
    %43 = vector.shape_cast %42 : vector<1x2x32xf32> to vector<2x32xf32>
    %cst_19 = arith.constant dense<0.000000e+00> : vector<2x32xf32>
    %44 = tpu.matmul %36, %0, %cst_19 {dimension_numbers = #tpu.dot_dimension_numbers<[1], [0], [0], [1], [0, 0, 1, 1], [], []>} : vector<2x32xf32>, vector<32x32xf32>, vector<2x32xf32> -> vector<2x32xf32>
    %45 = arith.addf %43, %44 : vector<2x32xf32>
    %46 = math.tanh %45 : vector<2x32xf32>
    %47 = tpu.concatenate %46, %41 in 1 : vector<2x32xf32>, vector<2x32xf32> -> vector<2x64xf32>
    %cst_20 = arith.constant dense<0.000000e+00> : vector<2x32xf32>
    %48 = tpu.matmul %47, %1, %cst_20 {dimension_numbers = #tpu.dot_dimension_numbers<[1], [0], [0], [1], [0, 0, 1, 1], [], []>} : vector<2x64xf32>, vector<64x32xf32>, vector<2x32xf32> -> vector<2x32xf32>
    %49 = vector.broadcast %2 : vector<1x32xf32> to vector<2x32xf32>
    %50 = arith.addf %48, %49 : vector<2x32xf32>
    %51 = math.tanh %50 : vector<2x32xf32>
    %52 = vector.extract_strided_slice %9 {offsets = [4, 0, 0], sizes = [1, 2, 32], strides = [1, 1, 1]} : vector<8x2x32xf32> to vector<1x2x32xf32>
    %53 = vector.shape_cast %52 : vector<1x2x32xf32> to vector<2x32xf32>
    %cst_21 = arith.constant dense<0.000000e+00> : vector<2x32xf32>
    %54 = tpu.matmul %46, %0, %cst_21 {dimension_numbers = #tpu.dot_dimension_numbers<[1], [0], [0], [1], [0, 0, 1, 1], [], []>} : vector<2x32xf32>, vector<32x32xf32>, vector<2x32xf32> -> vector<2x32xf32>
    %55 = arith.addf %53, %54 : vector<2x32xf32>
    %56 = math.tanh %55 : vector<2x32xf32>
    %57 = tpu.concatenate %56, %51 in 1 : vector<2x32xf32>, vector<2x32xf32> -> vector<2x64xf32>
    %cst_22 = arith.constant dense<0.000000e+00> : vector<2x32xf32>
    %58 = tpu.matmul %57, %1, %cst_22 {dimension_numbers = #tpu.dot_dimension_numbers<[1], [0], [0], [1], [0, 0, 1, 1], [], []>} : vector<2x64xf32>, vector<64x32xf32>, vector<2x32xf32> -> vector<2x32xf32>
    %59 = vector.broadcast %2 : vector<1x32xf32> to vector<2x32xf32>
    %60 = arith.addf %58, %59 : vector<2x32xf32>
    %61 = math.tanh %60 : vector<2x32xf32>
    %62 = vector.extract_strided_slice %9 {offsets = [5, 0, 0], sizes = [1, 2, 32], strides = [1, 1, 1]} : vector<8x2x32xf32> to vector<1x2x32xf32>
    %63 = vector.shape_cast %62 : vector<1x2x32xf32> to vector<2x32xf32>
    %cst_23 = arith.constant dense<0.000000e+00> : vector<2x32xf32>
    %64 = tpu.matmul %56, %0, %cst_23 {dimension_numbers = #tpu.dot_dimension_numbers<[1], [0], [0], [1], [0, 0, 1, 1], [], []>} : vector<2x32xf32>, vector<32x32xf32>, vector<2x32xf32> -> vector<2x32xf32>
    %65 = arith.addf %63, %64 : vector<2x32xf32>
    %66 = math.tanh %65 : vector<2x32xf32>
    %67 = tpu.concatenate %66, %61 in 1 : vector<2x32xf32>, vector<2x32xf32> -> vector<2x64xf32>
    %cst_24 = arith.constant dense<0.000000e+00> : vector<2x32xf32>
    %68 = tpu.matmul %67, %1, %cst_24 {dimension_numbers = #tpu.dot_dimension_numbers<[1], [0], [0], [1], [0, 0, 1, 1], [], []>} : vector<2x64xf32>, vector<64x32xf32>, vector<2x32xf32> -> vector<2x32xf32>
    %69 = vector.broadcast %2 : vector<1x32xf32> to vector<2x32xf32>
    %70 = arith.addf %68, %69 : vector<2x32xf32>
    %71 = math.tanh %70 : vector<2x32xf32>
    %72 = vector.extract_strided_slice %9 {offsets = [6, 0, 0], sizes = [1, 2, 32], strides = [1, 1, 1]} : vector<8x2x32xf32> to vector<1x2x32xf32>
    %73 = vector.shape_cast %72 : vector<1x2x32xf32> to vector<2x32xf32>
    %cst_25 = arith.constant dense<0.000000e+00> : vector<2x32xf32>
    %74 = tpu.matmul %66, %0, %cst_25 {dimension_numbers = #tpu.dot_dimension_numbers<[1], [0], [0], [1], [0, 0, 1, 1], [], []>} : vector<2x32xf32>, vector<32x32xf32>, vector<2x32xf32> -> vector<2x32xf32>
    %75 = arith.addf %73, %74 : vector<2x32xf32>
    %76 = math.tanh %75 : vector<2x32xf32>
    %77 = tpu.concatenate %76, %71 in 1 : vector<2x32xf32>, vector<2x32xf32> -> vector<2x64xf32>
    %cst_26 = arith.constant dense<0.000000e+00> : vector<2x32xf32>
    %78 = tpu.matmul %77, %1, %cst_26 {dimension_numbers = #tpu.dot_dimension_numbers<[1], [0], [0], [1], [0, 0, 1, 1], [], []>} : vector<2x64xf32>, vector<64x32xf32>, vector<2x32xf32> -> vector<2x32xf32>
    %79 = vector.broadcast %2 : vector<1x32xf32> to vector<2x32xf32>
    %80 = arith.addf %78, %79 : vector<2x32xf32>
    %81 = math.tanh %80 : vector<2x32xf32>
    %82 = vector.extract_strided_slice %9 {offsets = [7, 0, 0], sizes = [1, 2, 32], strides = [1, 1, 1]} : vector<8x2x32xf32> to vector<1x2x32xf32>
    %83 = vector.shape_cast %82 : vector<1x2x32xf32> to vector<2x32xf32>
    %cst_27 = arith.constant dense<0.000000e+00> : vector<2x32xf32>
    %84 = tpu.matmul %76, %0, %cst_27 {dimension_numbers = #tpu.dot_dimension_numbers<[1], [0], [0], [1], [0, 0, 1, 1], [], []>} : vector<2x32xf32>, vector<32x32xf32>, vector<2x32xf32> -> vector<2x32xf32>
    %85 = arith.addf %83, %84 : vector<2x32xf32>
    %86 = math.tanh %85 : vector<2x32xf32>
    %87 = tpu.concatenate %86, %81 in 1 : vector<2x32xf32>, vector<2x32xf32> -> vector<2x64xf32>
    %cst_28 = arith.constant dense<0.000000e+00> : vector<2x32xf32>
    %88 = tpu.matmul %87, %1, %cst_28 {dimension_numbers = #tpu.dot_dimension_numbers<[1], [0], [0], [1], [0, 0, 1, 1], [], []>} : vector<2x64xf32>, vector<64x32xf32>, vector<2x32xf32> -> vector<2x32xf32>
    %89 = vector.broadcast %2 : vector<1x32xf32> to vector<2x32xf32>
    %90 = arith.addf %88, %89 : vector<2x32xf32>
    %91 = math.tanh %90 : vector<2x32xf32>
    %c0_29 = arith.constant 0 : index
    %c0_30 = arith.constant 0 : index
    %92 = vector.load %arg6[%c0_29, %c0_30] : memref<32x8xf32, #tpu.memory_space<vmem>>, vector<32x8xf32>
    %cst_31 = arith.constant dense<0.000000e+00> : vector<2x8xf32>
    %93 = tpu.matmul %91, %92, %cst_31 {dimension_numbers = #tpu.dot_dimension_numbers<[1], [0], [0], [1], [0, 0, 1, 1], [], []>} : vector<2x32xf32>, vector<32x8xf32>, vector<2x8xf32> -> vector<2x8xf32>
    %c0_32 = arith.constant 0 : index
    %c0_33 = arith.constant 0 : index
    %94 = vector.load %arg7[%c0_32, %c0_33] : memref<1x8xf32, #tpu.memory_space<vmem>>, vector<1x8xf32>
    %95 = vector.broadcast %94 : vector<1x8xf32> to vector<2x8xf32>
    %96 = arith.addf %93, %95 : vector<2x8xf32>
    %c0_34 = arith.constant 0 : index
    %c0_35 = arith.constant 0 : index
    %97 = vector.load %arg8[%c0_34, %c0_35] : memref<2x8xf32, #tpu.memory_space<vmem>>, vector<2x8xf32>
    tpu.vector_store %arg8[%c0_34, %c0_35], %96 {strides = array<i32>} : memref<2x8xf32, #tpu.memory_space<vmem>>, vector<2x8xf32>,
    return
  }
}

</mosaic_0001>

<llo_original>
// kernel: tpu_custom_call.1
$region0: #{tpu_custom_call.1}
  #allocation0 [shape = 'u32[]', space=smem, size = 0x4, offset = 0x4, fixed_abs, tag = 'smem constant byte address 0x4 - core index']
  #allocation1 [shape = 'u32[72,128]{1,0:T(1,128)}', space=vmem, size = 0x9000, scoped, tag = 'internal scratch']
  %s0 = inlined_call_operand.vmem [shape: f32[16,16], index: 0, kind: input, shape index: {}]
  %s1 = inlined_call_operand.vmem [shape: f32[16,32], index: 1, kind: input, shape index: {}]
  %s2 = inlined_call_operand.vmem [shape: f32[32,32], index: 2, kind: input, shape index: {}]
  %s3 = inlined_call_operand.vmem [shape: f32[1,32], index: 3, kind: input, shape index: {}]
  %s4 = inlined_call_operand.vmem [shape: f32[64,32], index: 4, kind: input, shape index: {}]
  %s5 = inlined_call_operand.vmem [shape: f32[1,32], index: 5, kind: input, shape index: {}]
  %s6 = inlined_call_operand.vmem [shape: f32[32,8], index: 6, kind: input, shape index: {}]
  %s7 = inlined_call_operand.vmem [shape: f32[1,8], index: 7, kind: input, shape index: {}]
  %s8 = inlined_call_operand.hbm [shape: f32[2,8], index: 8, kind: output, shape index: {}]
  %s9 = sld [smem:[#allocation0]]
  $region42: #{tpu_custom_call.1} parent=0
    _
  %s11 = ssub.s32 1, %s9
  %s12 = scalar_select 0, %s11, %s9
  $region1: #{tpu_custom_call.1} parent=0
    #allocation2 [shape = 'u8[1024]{0}', space=vmem, size = 0x400, scoped, tag = 'output window, operand 0, single buffered']
    #allocation3 [shape = 's32[1]{0}', space=sflag, size = 0x4, scoped, tag = 'scoped memory for tpu_custom_call.1']
    %13 = vsyncpa [#allocation3], 0
    // Predicated region
    $region2: #{tpu_custom_call.1} parent=1 // pred_check
      _
    $region3: #{tpu_custom_call.1} parent=1 // pred_check_branch
      %15 = sbr.rel (0) target = $region5
    $region4: #{tpu_custom_call.1} parent=1 // pred_region
      _
    $region5: #{tpu_custom_call.1} parent=1 // pred_fallthru
      _
    // Predicated region
    $region6: #{tpu_custom_call.1} parent=1 // pred_check
      _
    $region7: #{tpu_custom_call.1} parent=1 // pred_check_branch
      %17 = sbr.rel (0) target = $region9
    $region8: #{tpu_custom_call.1} parent=1 // pred_region
      _
    $region9: #{tpu_custom_call.1} parent=1 // pred_fallthru
      _
    // Predicated region
    $region10: #{tpu_custom_call.1} parent=1 // pred_check
      _
    $region11: #{tpu_custom_call.1} parent=1 // pred_check_branch
      %19 = sbr.rel (0) target = $region13
    $region12: #{tpu_custom_call.1} parent=1 // pred_region
      _
    $region13: #{tpu_custom_call.1} parent=1 // pred_fallthru
      _
    // Predicated region
    $region14: #{tpu_custom_call.1} parent=1 // pred_check
      _
    $region15: #{tpu_custom_call.1} parent=1 // pred_check_branch
      %21 = sbr.rel (0) target = $region17
    $region16: #{tpu_custom_call.1} parent=1 // pred_region
      _
    $region17: #{tpu_custom_call.1} parent=1 // pred_fallthru
      _
    // Predicated region
    $region18: #{tpu_custom_call.1} parent=1 // pred_check
      _
    $region19: #{tpu_custom_call.1} parent=1 // pred_check_branch
      %23 = sbr.rel (0) target = $region21
    $region20: #{tpu_custom_call.1} parent=1 // pred_region
      _
    $region21: #{tpu_custom_call.1} parent=1 // pred_fallthru
      _
    // Predicated region
    $region22: #{tpu_custom_call.1} parent=1 // pred_check
      _
    $region23: #{tpu_custom_call.1} parent=1 // pred_check_branch
      %25 = sbr.rel (0) target = $region25
    $region24: #{tpu_custom_call.1} parent=1 // pred_region
      _
    $region25: #{tpu_custom_call.1} parent=1 // pred_fallthru
      _
    // Predicated region
    $region26: #{tpu_custom_call.1} parent=1 // pred_check
      _
    $region27: #{tpu_custom_call.1} parent=1 // pred_check_branch
      %27 = sbr.rel (0) target = $region29
    $region28: #{tpu_custom_call.1} parent=1 // pred_region
      _
    $region29: #{tpu_custom_call.1} parent=1 // pred_fallthru
      _
    // Predicated region
    $region30: #{tpu_custom_call.1} parent=1 // pred_check
      _
    $region31: #{tpu_custom_call.1} parent=1 // pred_check_branch
      %29 = sbr.rel (0) target = $region33
    $region32: #{tpu_custom_call.1} parent=1 // pred_region
      _
    $region33: #{tpu_custom_call.1} parent=1 // pred_fallthru
      _
    %v30 = vld [vmem:[%s2] sm:$0xff]
    %v31 = vld [vmem:[%s2 + $0x8] sm:$0xff]
    %v32 = vld [vmem:[%s2 + $0x10] sm:$0xff]
    %v33 = vld [vmem:[%s2 + $0x18] sm:$0xff]
    %v34 = vld [vmem:[%s4] sm:$0xff]
    %v35 = vld [vmem:[%s4 + $0x8] sm:$0xff]
    %v36 = vld [vmem:[%s4 + $0x10] sm:$0xff]
    %v37 = vld [vmem:[%s4 + $0x18] sm:$0xff]
    %v38 = vld [vmem:[%s4 + $0x20] sm:$0xff]
    %v39 = vld [vmem:[%s4 + $0x28] sm:$0xff]
    %v40 = vld [vmem:[%s4 + $0x30] sm:$0xff]
    %v41 = vld [vmem:[%s4 + $0x38] sm:$0xff]
    %v42 = vld [vmem:[%s5] sm:$0x1]
    %v43 = vld [vmem:[%s0] sm:$0xff]
    %v44 = vld [vmem:[%s0 + $0x8] sm:$0xff]
    %v45 = vld [vmem:[%s1] sm:$0xff]
    %v46 = vld [vmem:[%s1 + $0x8] sm:$0xff]
    %v47 = vld [vmem:[%s3] sm:$0x1]
    %v49 = vperm.slane %v47, 0
    %vm51 = vcmask 130048
    %v53 = vsel %vm51, %v43, 0
    %v56 = vsel %vm51, %v44, 0
    %58 = vmatpush.msra.mxu0 0.0
    %59 = vmatpush.msra.mxu0 0.0
    %60 = vmatpush.msra.mxu0 0.0
    %61 = vmatpush.msra.mxu0 0.0
    %62 = vmatpush.msra.mxu0 0.0
    %63 = vmatpush.msra.mxu0 0.0
    %64 = vmatpush.msra.mxu0 0.0
    %65 = vmatpush.msra.mxu0 0.0
    %66 = vmatpush.msra.mxu0 0.0
    %67 = vmatpush.msra.mxu0 0.0
    %68 = vmatpush.msra.mxu0 0.0
    %69 = vmatpush.msra.mxu0 0.0
    %70 = vmatpush.msra.mxu0 0.0
    %71 = vmatpush.msra.mxu0 0.0
    %72 = vmatpush.msra.mxu0 %v46
    %73 = vmatpush.msra.mxu0 %v45
    %74 = vmatmul.f32.gmra.mxu0 %v53
    %v75 = vpop.f32.mrf.mxu0
    %v76 = vadd.f32 %v49, %v75
    %77 = vmatmul.f32.gmra.mxu0 %v56
    %v78 = vpop.f32.mrf.mxu0
    %v79 = vadd.f32 %v49, %v78
    %80 = vdwg.mxu0
    %v83 = vrot.slane %v76, 2
    %v84 = vrot.slane %v76, 4
    %v85 = vrot.slane %v76, 6
    %v86 = vrot.slane %v79, 2
    %v87 = vrot.slane %v79, 4
    %v88 = vrot.slane %v79, 6
    %vm95 = vcmask 261120
    %v97 = vsel %vm95, 0.0, 0
    %99 = vmatpush.msra.mxu0 0.0
    %100 = vmatpush.msra.mxu0 0.0
    %101 = vmatpush.msra.mxu0 0.0
    %102 = vmatpush.msra.mxu0 0.0
    %103 = vmatpush.msra.mxu0 0.0
    %104 = vmatpush.msra.mxu0 0.0
    %105 = vmatpush.msra.mxu0 0.0
    %106 = vmatpush.msra.mxu0 0.0
    %107 = vmatpush.msra.mxu0 0.0
    %108 = vmatpush.msra.mxu0 0.0
    %109 = vmatpush.msra.mxu0 0.0
    %110 = vmatpush.msra.mxu0 0.0
    %111 = vmatpush.msra.mxu0 %v33
    %112 = vmatpush.msra.mxu0 %v32
    %113 = vmatpush.msra.mxu0 %v31
    %114 = vmatpush.msra.mxu0 %v30
    %115 = vmatmul.f32.gmra.mxu0 %v97
    %v116 = vpop.f32.mrf.mxu0
    %v117 = vadd.f32 0.0, %v116
    %118 = vdwg.mxu0
    %v119 = vadd.f32 %v76, %v117
    %v120 = vtanh.pop %v119
    %v121 = vsel %vm95, %v120, 0.0
    %v123 = vperm.slane %v42, 0
    %vm125 = vcmask 523264
    %v127 = vsel %vm125, %v121, 0
    %129 = vmatpush.msra.mxu0 0.0
    %130 = vmatpush.msra.mxu0 0.0
    %131 = vmatpush.msra.mxu0 0.0
    %132 = vmatpush.msra.mxu0 0.0
    %133 = vmatpush.msra.mxu0 0.0
    %134 = vmatpush.msra.mxu0 0.0
    %135 = vmatpush.msra.mxu0 0.0
    %136 = vmatpush.msra.mxu0 0.0
    %137 = vmatpush.msra.mxu0 %v41
    %138 = vmatpush.msra.mxu0 %v40
    %139 = vmatpush.msra.mxu0 %v39
    %140 = vmatpush.msra.mxu0 %v38
    %141 = vmatpush.msra.mxu0 %v37
    %142 = vmatpush.msra.mxu0 %v36
    %143 = vmatpush.msra.mxu0 %v35
    %144 = vmatpush.msra.mxu0 %v34
    %145 = vmatmul.f32.gmra.mxu0 %v127
    %v146 = vpop.f32.mrf.mxu0
    %v147 = vadd.f32 %v123, %v146
    %148 = vdwg.mxu0
    %v149 = vtanh.pop %v147
    %v151 = vsel %vm95, %v120, 0
    %153 = vmatpush.msra.mxu0 0.0
    %154 = vmatpush.msra.mxu0 0.0
    %155 = vmatpush.msra.mxu0 0.0
    %156 = vmatpush.msra.mxu0 0.0
    %157 = vmatpush.msra.mxu0 0.0
    %158 = vmatpush.msra.mxu0 0.0
    %159 = vmatpush.msra.mxu0 0.0
    %160 = vmatpush.msra.mxu0 0.0
    %161 = vmatpush.msra.mxu0 0.0
    %162 = vmatpush.msra.mxu0 0.0
    %163 = vmatpush.msra.mxu0 0.0
    %164 = vmatpush.msra.mxu0 0.0
    %165 = vmatpush.msra.mxu0 %v33
    %166 = vmatpush.msra.mxu0 %v32
    %167 = vmatpush.msra.mxu0 %v31
    %168 = vmatpush.msra.mxu0 %v30
    %169 = vmatmul.f32.gmra.mxu0 %v151
    %v170 = vpop.f32.mrf.mxu0
    %v171 = vadd.f32 0.0, %v170
    %172 = vdwg.mxu0
    %v173 = vadd.f32 %v83, %v171
    %v174 = vtanh.pop %v173
    %176 = vrot.lane.b32.xlu0 %v149, 32
    %v177 = vpop.permute.xlu0 %176
    %v179 = vsel %vm95, %v174, %v177
    %v181 = vsel %vm125, %v179, 0
    %183 = vmatpush.msra.mxu0 0.0
    %184 = vmatpush.msra.mxu0 0.0
    %185 = vmatpush.msra.mxu0 0.0
    %186 = vmatpush.msra.mxu0 0.0
    %187 = vmatpush.msra.mxu0 0.0
    %188 = vmatpush.msra.mxu0 0.0
    %189 = vmatpush.msra.mxu0 0.0
    %190 = vmatpush.msra.mxu0 0.0
    %191 = vmatpush.msra.mxu0 %v41
    %192 = vmatpush.msra.mxu0 %v40
    %193 = vmatpush.msra.mxu0 %v39
    %194 = vmatpush.msra.mxu0 %v38
    %195 = vmatpush.msra.mxu0 %v37
    %196 = vmatpush.msra.mxu0 %v36
    %197 = vmatpush.msra.mxu0 %v35
    %198 = vmatpush.msra.mxu0 %v34
    %199 = vmatmul.f32.gmra.mxu0 %v181
    %v200 = vpop.f32.mrf.mxu0
    %v201 = vadd.f32 %v123, %v200
    %202 = vdwg.mxu0
    %v203 = vtanh.pop %v201
    %v205 = vsel %vm95, %v174, 0
    %207 = vmatpush.msra.mxu0 0.0
    %208 = vmatpush.msra.mxu0 0.0
    %209 = vmatpush.msra.mxu0 0.0
    %210 = vmatpush.msra.mxu0 0.0
    %211 = vmatpush.msra.mxu0 0.0
    %212 = vmatpush.msra.mxu0 0.0
    %213 = vmatpush.msra.mxu0 0.0
    %214 = vmatpush.msra.mxu0 0.0
    %215 = vmatpush.msra.mxu0 0.0
    %216 = vmatpush.msra.mxu0 0.0
    %217 = vmatpush.msra.mxu0 0.0
    %218 = vmatpush.msra.mxu0 0.0
    %219 = vmatpush.msra.mxu0 %v33
    %220 = vmatpush.msra.mxu0 %v32
    %221 = vmatpush.msra.mxu0 %v31
    %222 = vmatpush.msra.mxu0 %v30
    %223 = vmatmul.f32.gmra.mxu0 %v205
    %v224 = vpop.f32.mrf.mxu0
    %v225 = vadd.f32 0.0, %v224
    %226 = vdwg.mxu0
    %v227 = vadd.f32 %v84, %v225
    %v228 = vtanh.pop %v227
    %230 = vrot.lane.b32.xlu0 %v203, 32
    %v231 = vpop.permute.xlu0 %230
    %v233 = vsel %vm95, %v228, %v231
    %v235 = vsel %vm125, %v233, 0
    %237 = vmatpush.msra.mxu0 0.0
    %238 = vmatpush.msra.mxu0 0.0
    %239 = vmatpush.msra.mxu0 0.0
    %240 = vmatpush.msra.mxu0 0.0
    %241 = vmatpush.msra.mxu0 0.0
    %242 = vmatpush.msra.mxu0 0.0
    %243 = vmatpush.msra.mxu0 0.0
    %244 = vmatpush.msra.mxu0 0.0
    %245 = vmatpush.msra.mxu0 %v41
    %246 = vmatpush.msra.mxu0 %v40
    %247 = vmatpush.msra.mxu0 %v39
    %248 = vmatpush.msra.mxu0 %v38
    %249 = vmatpush.msra.mxu0 %v37
    %250 = vmatpush.msra.mxu0 %v36
    %251 = vmatpush.msra.mxu0 %v35
    %252 = vmatpush.msra.mxu0 %v34
    %253 = vmatmul.f32.gmra.mxu0 %v235
    %v254 = vpop.f32.mrf.mxu0
    %v255 = vadd.f32 %v123, %v254
    %256 = vdwg.mxu0
    %v257 = vtanh.pop %v255
    %v259 = vsel %vm95, %v228, 0
    %261 = vmatpush.msra.mxu0 0.0
    %262 = vmatpush.msra.mxu0 0.0
    %263 = vmatpush.msra.mxu0 0.0
    %264 = vmatpush.msra.mxu0 0.0
    %265 = vmatpush.msra.mxu0 0.0
    %266 = vmatpush.msra.mxu0 0.0
    %267 = vmatpush.msra.mxu0 0.0
    %268 = vmatpush.msra.mxu0 0.0
    %269 = vmatpush.msra.mxu0 0.0
    %270 = vmatpush.msra.mxu0 0.0
    %271 = vmatpush.msra.mxu0 0.0
    %272 = vmatpush.msra.mxu0 0.0
    %273 = vmatpush.msra.mxu0 %v33
    %274 = vmatpush.msra.mxu0 %v32
    %275 = vmatpush.msra.mxu0 %v31
    %276 = vmatpush.msra.mxu0 %v30
    %277 = vmatmul.f32.gmra.mxu0 %v259
    %v278 = vpop.f32.mrf.mxu0
    %v279 = vadd.f32 0.0, %v278
    %280 = vdwg.mxu0
    %v281 = vadd.f32 %v85, %v279
    %v282 = vtanh.pop %v281
    %284 = vrot.lane.b32.xlu0 %v257, 32
    %v285 = vpop.permute.xlu0 %284
    %v287 = vsel %vm95, %v282, %v285
    %v289 = vsel %vm125, %v287, 0
    %291 = vmatpush.msra.mxu0 0.0
    %292 = vmatpush.msra.mxu0 0.0
    %293 = vmatpush.msra.mxu0 0.0
    %294 = vmatpush.msra.mxu0 0.0
    %295 = vmatpush.msra.mxu0 0.0
    %296 = vmatpush.msra.mxu0 0.0
    %297 = vmatpush.msra.mxu0 0.0
    %298 = vmatpush.msra.mxu0 0.0
    %299 = vmatpush.msra.mxu0 %v41
    %300 = vmatpush.msra.mxu0 %v40
    %301 = vmatpush.msra.mxu0 %v39
    %302 = vmatpush.msra.mxu0 %v38
    %303 = vmatpush.msra.mxu0 %v37
    %304 = vmatpush.msra.mxu0 %v36
    %305 = vmatpush.msra.mxu0 %v35
    %306 = vmatpush.msra.mxu0 %v34
    %307 = vmatmul.f32.gmra.mxu0 %v289
    %v308 = vpop.f32.mrf.mxu0
    %v309 = vadd.f32 %v123, %v308
    %310 = vdwg.mxu0
    %v311 = vtanh.pop %v309
    %v313 = vsel %vm95, %v282, 0
    %315 = vmatpush.msra.mxu0 0.0
    %316 = vmatpush.msra.mxu0 0.0
    %317 = vmatpush.msra.mxu0 0.0
    %318 = vmatpush.msra.mxu0 0.0
    %319 = vmatpush.msra.mxu0 0.0
    %320 = vmatpush.msra.mxu0 0.0
    %321 = vmatpush.msra.mxu0 0.0
    %322 = vmatpush.msra.mxu0 0.0
    %323 = vmatpush.msra.mxu0 0.0
    %324 = vmatpush.msra.mxu0 0.0
    %325 = vmatpush.msra.mxu0 0.0
    %326 = vmatpush.msra.mxu0 0.0
    %327 = vmatpush.msra.mxu0 %v33
    %328 = vmatpush.msra.mxu0 %v32
    %329 = vmatpush.msra.mxu0 %v31
    %330 = vmatpush.msra.mxu0 %v30
    %331 = vmatmul.f32.gmra.mxu0 %v313
    %v332 = vpop.f32.mrf.mxu0
    %v333 = vadd.f32 0.0, %v332
    %334 = vdwg.mxu0
    %v335 = vadd.f32 %v79, %v333
    %v336 = vtanh.pop %v335
    %338 = vrot.lane.b32.xlu0 %v311, 32
    %v339 = vpop.permute.xlu0 %338
    %v341 = vsel %vm95, %v336, %v339
    %v343 = vsel %vm125, %v341, 0
    %345 = vmatpush.msra.mxu0 0.0
    %346 = vmatpush.msra.mxu0 0.0
    %347 = vmatpush.msra.mxu0 0.0
    %348 = vmatpush.msra.mxu0 0.0
    %349 = vmatpush.msra.mxu0 0.0
    %350 = vmatpush.msra.mxu0 0.0
    %351 = vmatpush.msra.mxu0 0.0
    %352 = vmatpush.msra.mxu0 0.0
    %353 = vmatpush.msra.mxu0 %v41
    %354 = vmatpush.msra.mxu0 %v40
    %355 = vmatpush.msra.mxu0 %v39
    %356 = vmatpush.msra.mxu0 %v38
    %357 = vmatpush.msra.mxu0 %v37
    %358 = vmatpush.msra.mxu0 %v36
    %359 = vmatpush.msra.mxu0 %v35
    %360 = vmatpush.msra.mxu0 %v34
    %361 = vmatmul.f32.gmra.mxu0 %v343
    %v362 = vpop.f32.mrf.mxu0
    %v363 = vadd.f32 %v123, %v362
    %364 = vdwg.mxu0
    %v365 = vtanh.pop %v363
    %v367 = vsel %vm95, %v336, 0
    %369 = vmatpush.msra.mxu0 0.0
    %370 = vmatpush.msra.mxu0 0.0
    %371 = vmatpush.msra.mxu0 0.0
    %372 = vmatpush.msra.mxu0 0.0
    %373 = vmatpush.msra.mxu0 0.0
    %374 = vmatpush.msra.mxu0 0.0
    %375 = vmatpush.msra.mxu0 0.0
    %376 = vmatpush.msra.mxu0 0.0
    %377 = vmatpush.msra.mxu0 0.0
    %378 = vmatpush.msra.mxu0 0.0
    %379 = vmatpush.msra.mxu0 0.0
    %380 = vmatpush.msra.mxu0 0.0
    %381 = vmatpush.msra.mxu0 %v33
    %382 = vmatpush.msra.mxu0 %v32
    %383 = vmatpush.msra.mxu0 %v31
    %384 = vmatpush.msra.mxu0 %v30
    %385 = vmatmul.f32.gmra.mxu0 %v367
    %v386 = vpop.f32.mrf.mxu0
    %v387 = vadd.f32 0.0, %v386
    %388 = vdwg.mxu0
    %v389 = vadd.f32 %v86, %v387
    %v390 = vtanh.pop %v389
    %392 = vrot.lane.b32.xlu0 %v365, 32
    %v393 = vpop.permute.xlu0 %392
    %v395 = vsel %vm95, %v390, %v393
    %v397 = vsel %vm125, %v395, 0
    %399 = vmatpush.msra.mxu0 0.0
    %400 = vmatpush.msra.mxu0 0.0
    %401 = vmatpush.msra.mxu0 0.0
    %402 = vmatpush.msra.mxu0 0.0
    %403 = vmatpush.msra.mxu0 0.0
    %404 = vmatpush.msra.mxu0 0.0
    %405 = vmatpush.msra.mxu0 0.0
    %406 = vmatpush.msra.mxu0 0.0
    %407 = vmatpush.msra.mxu0 %v41
    %408 = vmatpush.msra.mxu0 %v40
    %409 = vmatpush.msra.mxu0 %v39
    %410 = vmatpush.msra.mxu0 %v38
    %411 = vmatpush.msra.mxu0 %v37
    %412 = vmatpush.msra.mxu0 %v36
    %413 = vmatpush.msra.mxu0 %v35
    %414 = vmatpush.msra.mxu0 %v34
    %415 = vmatmul.f32.gmra.mxu0 %v397
    %v416 = vpop.f32.mrf.mxu0
    %v417 = vadd.f32 %v123, %v416
    %418 = vdwg.mxu0
    %v419 = vtanh.pop %v417
    %v421 = vsel %vm95, %v390, 0
    %423 = vmatpush.msra.mxu0 0.0
    %424 = vmatpush.msra.mxu0 0.0
    %425 = vmatpush.msra.mxu0 0.0
    %426 = vmatpush.msra.mxu0 0.0
    %427 = vmatpush.msra.mxu0 0.0
    %428 = vmatpush.msra.mxu0 0.0
    %429 = vmatpush.msra.mxu0 0.0
    %430 = vmatpush.msra.mxu0 0.0
    %431 = vmatpush.msra.mxu0 0.0
    %432 = vmatpush.msra.mxu0 0.0
    %433 = vmatpush.msra.mxu0 0.0
    %434 = vmatpush.msra.mxu0 0.0
    %435 = vmatpush.msra.mxu0 %v33
    %436 = vmatpush.msra.mxu0 %v32
    %437 = vmatpush.msra.mxu0 %v31
    %438 = vmatpush.msra.mxu0 %v30
    %439 = vmatmul.f32.gmra.mxu0 %v421
    %v440 = vpop.f32.mrf.mxu0
    %v441 = vadd.f32 0.0, %v440
    %442 = vdwg.mxu0
    %v443 = vadd.f32 %v87, %v441
    %v444 = vtanh.pop %v443
    %446 = vrot.lane.b32.xlu0 %v419, 32
    %v447 = vpop.permute.xlu0 %446
    %v449 = vsel %vm95, %v444, %v447
    %v451 = vsel %vm125, %v449, 0
    %453 = vmatpush.msra.mxu0 0.0
    %454 = vmatpush.msra.mxu0 0.0
    %455 = vmatpush.msra.mxu0 0.0
    %456 = vmatpush.msra.mxu0 0.0
    %457 = vmatpush.msra.mxu0 0.0
    %458 = vmatpush.msra.mxu0 0.0
    %459 = vmatpush.msra.mxu0 0.0
    %460 = vmatpush.msra.mxu0 0.0
    %461 = vmatpush.msra.mxu0 %v41
    %462 = vmatpush.msra.mxu0 %v40
    %463 = vmatpush.msra.mxu0 %v39
    %464 = vmatpush.msra.mxu0 %v38
    %465 = vmatpush.msra.mxu0 %v37
    %466 = vmatpush.msra.mxu0 %v36
    %467 = vmatpush.msra.mxu0 %v35
    %468 = vmatpush.msra.mxu0 %v34
    %469 = vmatmul.f32.gmra.mxu0 %v451
    %v470 = vpop.f32.mrf.mxu0
    %v471 = vadd.f32 %v123, %v470
    %472 = vdwg.mxu0
    %v473 = vtanh.pop %v471
    %v475 = vsel %vm95, %v444, 0
    %477 = vmatpush.msra.mxu0 0.0
    %478 = vmatpush.msra.mxu0 0.0
    %479 = vmatpush.msra.mxu0 0.0
    %480 = vmatpush.msra.mxu0 0.0
    %481 = vmatpush.msra.mxu0 0.0
    %482 = vmatpush.msra.mxu0 0.0
    %483 = vmatpush.msra.mxu0 0.0
    %484 = vmatpush.msra.mxu0 0.0
    %485 = vmatpush.msra.mxu0 0.0
    %486 = vmatpush.msra.mxu0 0.0
    %487 = vmatpush.msra.mxu0 0.0
    %488 = vmatpush.msra.mxu0 0.0
    %489 = vmatpush.msra.mxu0 %v33
    %490 = vmatpush.msra.mxu0 %v32
    %491 = vmatpush.msra.mxu0 %v31
    %492 = vmatpush.msra.mxu0 %v30
    %493 = vmatmul.f32.gmra.mxu0 %v475
    %v494 = vpop.f32.mrf.mxu0
    %v495 = vadd.f32 0.0, %v494
    %496 = vdwg.mxu0
    %v497 = vadd.f32 %v88, %v495
    %v498 = vtanh.pop %v497
    %500 = vrot.lane.b32.xlu0 %v473, 32
    %v501 = vpop.permute.xlu0 %500
    %v503 = vsel %vm95, %v498, %v501
    %v505 = vsel %vm125, %v503, 0
    %507 = vmatpush.msra.mxu0 0.0
    %508 = vmatpush.msra.mxu0 0.0
    %509 = vmatpush.msra.mxu0 0.0
    %510 = vmatpush.msra.mxu0 0.0
    %511 = vmatpush.msra.mxu0 0.0
    %512 = vmatpush.msra.mxu0 0.0
    %513 = vmatpush.msra.mxu0 0.0
    %514 = vmatpush.msra.mxu0 0.0
    %515 = vmatpush.msra.mxu0 %v41
    %516 = vmatpush.msra.mxu0 %v40
    %517 = vmatpush.msra.mxu0 %v39
    %518 = vmatpush.msra.mxu0 %v38
    %519 = vmatpush.msra.mxu0 %v37
    %520 = vmatpush.msra.mxu0 %v36
    %521 = vmatpush.msra.mxu0 %v35
    %522 = vmatpush.msra.mxu0 %v34
    %523 = vmatmul.f32.gmra.mxu0 %v505
    %v524 = vpop.f32.mrf.mxu0
    %v525 = vadd.f32 %v123, %v524
    %526 = vdwg.mxu0
    %v527 = vtanh.pop %v525
    %v528 = vld [vmem:[%s6] sm:$0xff]
    %v529 = vld [vmem:[%s6 + $0x8] sm:$0xff]
    %v530 = vld [vmem:[%s6 + $0x10] sm:$0xff]
    %v531 = vld [vmem:[%s6 + $0x18] sm:$0xff]
    %v532 = vld [vmem:[%s7] sm:$0x1]
    %v534 = vperm.slane %v532, 0
    %v537 = vsel %vm95, %v527, 0
    %539 = vmatpush.msra.mxu0 0.0
    %540 = vmatpush.msra.mxu0 0.0
    %541 = vmatpush.msra.mxu0 0.0
    %542 = vmatpush.msra.mxu0 0.0
    %543 = vmatpush.msra.mxu0 0.0
    %544 = vmatpush.msra.mxu0 0.0
    %545 = vmatpush.msra.mxu0 0.0
    %546 = vmatpush.msra.mxu0 0.0
    %547 = vmatpush.msra.mxu0 0.0
    %548 = vmatpush.msra.mxu0 0.0
    %549 = vmatpush.msra.mxu0 0.0
    %550 = vmatpush.msra.mxu0 0.0
    %551 = vmatpush.msra.mxu0 %v531
    %552 = vmatpush.msra.mxu0 %v530
    %553 = vmatpush.msra.mxu0 %v529
    %554 = vmatpush.msra.mxu0 %v528
    %555 = vmatmul.f32.gmra.mxu0 %v537
    %v556 = vpop.f32.mrf.mxu0
    %v557 = vadd.f32 %v534, %v556
    %558 = vdwg.mxu0
    %vm559 = vcmask 58368
    %560 = vst.msk [vmem:[#allocation2] sm:$0x3] %vm559, %v557
    // Predicated region
    $region34: #{tpu_custom_call.1} parent=1 // pred_check
      _
    $region35: #{tpu_custom_call.1} parent=1 // pred_check_branch
      %562 = sbr.rel (0) target = $region37
    $region36: #{tpu_custom_call.1} parent=1 // pred_region
      %564 = vsyncadd [#allocation3], 0
      %s566 = sshll.u32 [#allocation2], 4
      %s567 = int_to_ptr.vmem [resolvable:$true] %s566
      %s568 = sshll.u32 %s8, 4
      %s569 = int_to_ptr.hbm [resolvable:$true] %s568
      %571 = dma.vmem_to_hbm [thread:$0]  %s567, 32, %s569, [#allocation3]
    $region37: #{tpu_custom_call.1} parent=1 // pred_fallthru
      _
    // Predicated region
    $region38: #{tpu_custom_call.1} parent=1 // pred_check
      _
    $region39: #{tpu_custom_call.1} parent=1 // pred_check_branch
      %573 = sbr.rel (0) target = $region41
    $region40: #{tpu_custom_call.1} parent=1 // pred_region
      %575 = dma.done [#allocation3], 32
    $region41: #{tpu_custom_call.1} parent=1 // pred_fallthru
      _
    %576 = vsyncpa [#allocation3], 1

</llo_original>
